<compile_context>
chip_gen: v6e
topology: v6e:2x2x1
jax: 0.10.0
libtpu: 0.0.40
codegen_flags: <defaults>
</compile_context>

<pallas_src>
import jax
import jax.numpy as jnp
from jax.experimental import pallas as pl
from jax.experimental.pallas import tpu as pltpu

_LANES = 128                        # vreg lane width
_SUBLANES = 8                       # vreg sublane count
_MAX_COLS = 1024                    # wide lane-dense slab -> unmasked full-width vst
_MAX_TILE_BYTES = 4 * 1024 * 1024   # per-buffer tile cap; in+out double-buffered
                                    # = 16 MiB live, safe on v5e/v6e/v7x
_VMEM_LIMIT_BYTES = 32 * 1024 * 1024


def _identity_kernel(x_ref, o_ref):
    # Pure pass-through of the current VMEM tile.
    o_ref[...] = x_ref[...]


def _pick_cols(total):
    """Pick a lane-dense column count (multiple of 128, <= _MAX_COLS).

    Prefer a value that divides `total` exactly so no padding is required.
    Returns (cols, padded_total).
    """
    if total % _LANES == 0:
        # Try the widest multiple of 128 that divides total exactly.
        cols = _MAX_COLS
        while cols >= _LANES:
            if total % cols == 0:
                return cols, total
            cols -= _LANES
        # total is a multiple of 128, so cols == 128 always divides it; unreachable.
    # Ragged total: widest slab needed to hold the data, pad to whole rows.
    cols = min(_MAX_COLS, pl.cdiv(total, _LANES) * _LANES)
    padded_total = pl.cdiv(total, cols) * cols
    return cols, padded_total


def identity(x):
    """Pallas implementation of Identity.forward: returns x unchanged.

    The array is flattened to a wide, lane-dense 2D slab (last dim a multiple of
    128), copied through VMEM with large tiles sized against the per-generation
    VMEM budget, and reshaped back. The output is aliased onto the input buffer,
    so when the caller donates `x` (e.g. jit(..., donate_argnums=0)) no second
    HBM buffer is allocated; otherwise XLA inserts a defensive copy and the
    result is still correct.
    """
    orig_shape = x.shape
    orig_dtype = x.dtype
    total = x.size

    if total == 0:
        return x

    itemsize = jnp.dtype(orig_dtype).itemsize

    # ---- lane-dense 2D view ------------------------------------------------
    cols, padded_total = _pick_cols(total)
    rows = padded_total // cols

    x_flat = x.reshape(total)
    if padded_total != total:
        # Only for ragged totals: pad to whole lane-dense rows so we keep the
        # unmasked 128-lane store path; the pad is sliced off after the call.
        x_flat = jnp.pad(x_flat, (0, padded_total - total))
    x2d = x_flat.reshape(rows, cols)

    # ---- tile rows: biggest block under the per-buffer VMEM cap ------------
    max_tile_rows = max(_SUBLANES, _MAX_TILE_BYTES // (cols * itemsize))
    if rows <= max_tile_rows:
        tile_rows = rows                                        # full extent: always legal
    else:
        tile_rows = (max_tile_rows // _SUBLANES) * _SUBLANES    # multiple of 8 sublanes

    grid = (pl.cdiv(rows, tile_rows),)   # ragged last block handled by Pallas

    out2d = pl.pallas_call(
        _identity_kernel,
        out_shape=jax.ShapeDtypeStruct((rows, cols), orig_dtype),
        grid_spec=pltpu.PrefetchScalarGridSpec(
            num_scalar_prefetch=0,
            grid=grid,
            in_specs=[pl.BlockSpec((tile_rows, cols), lambda i: (i, 0))],
            out_specs=pl.BlockSpec((tile_rows, cols), lambda i: (i, 0)),
        ),
        # Write the output in place on top of the input buffer.
        input_output_aliases={0: 0},
        compiler_params=pltpu.CompilerParams(
            dimension_semantics=("parallel",),   # shards grid across 2 TCs on v7x
            vmem_limit_bytes=_VMEM_LIMIT_BYTES,
        ),
        cost_estimate=pl.CostEstimate(
            flops=0, transcendentals=0,
            bytes_accessed=2 * padded_total * itemsize),
    )(x2d)

    out_flat = out2d.reshape(padded_total)
    if padded_total != total:
        out_flat = out_flat[:total]
    return out_flat.reshape(orig_shape)


if __name__ == "__main__":
    key = jax.random.PRNGKey(0)
    # NCHW input consistent with a conv-style model: batch=2, channels=4, 16x16
    x = jax.random.normal(key, (2, 4, 16, 16), dtype=jnp.float32)

    y = identity(x)
    jax.block_until_ready(y)

    assert y.shape == x.shape and y.dtype == x.dtype
    assert bool(jnp.all(y == x))
    print("KERNEL_OK")
</pallas_src>

<mosaic_0001>
module attributes {stable_mosaic.version = 11 : i64} {
  func.func @_identity_kernel(%arg0: i32, %arg1: memref<2x1024xf32, #tpu.memory_space<vmem>>, %arg2: memref<2x1024xf32, #tpu.memory_space<vmem>>) attributes {dimension_semantics = [#tpu.dimension_semantics<parallel>], iteration_bounds = array<i64: 1>, scalar_prefetch = 0 : i64, scratch_operands = 0 : i64, tpu.core_type = #tpu.core_type<tc>, window_params = [{transform_indices = @transform_0, window_bounds = array<i64: 2, 1024>}, {transform_indices = @transform_1, window_bounds = array<i64: 2, 1024>}]} {
    %c0 = arith.constant 0 : index
    %c0_0 = arith.constant 0 : index
    %0 = vector.load %arg1[%c0, %c0_0] : memref<2x1024xf32, #tpu.memory_space<vmem>>, vector<2x1024xf32>
    %c0_1 = arith.constant 0 : index
    %c0_2 = arith.constant 0 : index
    %1 = vector.load %arg2[%c0_1, %c0_2] : memref<2x1024xf32, #tpu.memory_space<vmem>>, vector<2x1024xf32>
    tpu.vector_store %arg2[%c0_1, %c0_2], %0 {strides = array<i32>} : memref<2x1024xf32, #tpu.memory_space<vmem>>, vector<2x1024xf32>,
    return
  }
  func.func @transform_0(%arg0: i32) -> (i32, i32) {
    %c0_i32 = arith.constant 0 : i32
    %c0_i32_0 = arith.constant 0 : i32
    return %arg0, %c0_i32 : i32, i32
  }
  func.func @transform_1(%arg0: i32) -> (i32, i32) {
    %c0_i32 = arith.constant 0 : i32
    %c0_i32_0 = arith.constant 0 : i32
    return %arg0, %c0_i32 : i32, i32
  }
}

</mosaic_0001>

<llo_original>
// kernel: tpu_custom_call.1
$region0: #{tpu_custom_call.1}
  #allocation0 [shape = 'u32[]', space=smem, size = 0x4, offset = 0x4, fixed_abs, tag = 'smem constant byte address 0x4 - core index']
  #allocation1 [shape = 'u32[144,128]{1,0:T(1,128)}', space=vmem, size = 0x12000, scoped, tag = 'internal scratch']
  %s0 = inlined_call_operand.hbm [shape: f32[2,1024], index: 0, kind: input, shape index: {}, may-alias: {0,1}]
  %s1 = inlined_call_operand.hbm [shape: f32[2,1024], index: 1, kind: output, shape index: {}, may-alias: {0,1}]
  %s2 = sld [smem:[#allocation0]]
  $region18: #{tpu_custom_call.1} parent=0
    _
  %s4 = ssub.s32 1, %s2
  %s5 = scalar_select 0, %s4, %s2
  $region1: #{tpu_custom_call.1} parent=0
    #allocation2 [shape = 'u8[8192]{0}', space=vmem, size = 0x2000, scoped, tag = 'input window, operand 0, single buffered']
    #allocation3 [shape = 's32[1]{0}', space=sflag, size = 0x4, scoped, tag = 'scoped memory for tpu_custom_call.1']
    #allocation4 [shape = 's32[1]{0}', space=sflag, size = 0x4, scoped, tag = 'scoped memory for tpu_custom_call.1']
    #allocation5 [shape = 'u8[8192]{0}', space=vmem, size = 0x2000, scoped, tag = 'output window, operand 0, single buffered']
    %6 = vsyncpa [#allocation3], 0
    %7 = vsyncpa [#allocation4], 0
    // Predicated region
    $region2: #{tpu_custom_call.1} parent=1 // pred_check
      _
    $region3: #{tpu_custom_call.1} parent=1 // pred_check_branch
      %9 = sbr.rel (0) target = $region5
    $region4: #{tpu_custom_call.1} parent=1 // pred_region
      %s11 = ssub.s32 256, 256
      %12 = vsyncadd [#allocation3], %s11
      %s14 = sshll.u32 [#allocation2], 4
      %s15 = int_to_ptr.vmem [resolvable:$true] %s14
      %17 = dma.hbm_to_vmem [thread:$0]  %s0, 256, %s15, [#allocation3]
    $region5: #{tpu_custom_call.1} parent=1 // pred_fallthru
      _
    // Predicated region
    $region6: #{tpu_custom_call.1} parent=1 // pred_check
      _
    $region7: #{tpu_custom_call.1} parent=1 // pred_check_branch
      %19 = sbr.rel (0) target = $region9
    $region8: #{tpu_custom_call.1} parent=1 // pred_region
      %20 = dma.done [#allocation3], 256
    $region9: #{tpu_custom_call.1} parent=1 // pred_fallthru
      _
    %v21 = vld [vmem:[#allocation2] sm:$0xff]
    %v22 = vld [vmem:[#allocation2 + $0x8] sm:$0xff]
    %23 = vst [vmem:[#allocation5] sm:$0xff] %v21
    %24 = vst [vmem:[#allocation5 + $0x8] sm:$0xff] %v22
    // Predicated region
    $region10: #{tpu_custom_call.1} parent=1 // pred_check
      _
    $region11: #{tpu_custom_call.1} parent=1 // pred_check_branch
      %26 = sbr.rel (0) target = $region13
    $region12: #{tpu_custom_call.1} parent=1 // pred_region
      %s28 = ssub.s32 256, 256
      %29 = vsyncadd [#allocation4], %s28
      %s31 = sshll.u32 [#allocation5], 4
      %s32 = int_to_ptr.vmem [resolvable:$true] %s31
      %34 = dma.vmem_to_hbm [thread:$0]  %s32, 256, %s1, [#allocation4]
    $region13: #{tpu_custom_call.1} parent=1 // pred_fallthru
      _
    // Predicated region
    $region14: #{tpu_custom_call.1} parent=1 // pred_check
      _
    $region15: #{tpu_custom_call.1} parent=1 // pred_check_branch
      %36 = sbr.rel (0) target = $region17
    $region16: #{tpu_custom_call.1} parent=1 // pred_region
      %37 = dma.done [#allocation4], 256
    $region17: #{tpu_custom_call.1} parent=1 // pred_fallthru
      _
    %38 = vsyncpa [#allocation3], 1
    %39 = vsyncpa [#allocation4], 1

</llo_original>
